<compile_context>
chip_gen: v7x
topology: tpu7x:2x2x1
jax: 0.10.0
libtpu: 0.0.40
codegen_flags: <defaults>
</compile_context>

<pallas_src>
import functools
import numpy as np
import jax
import jax.numpy as jnp
from jax.experimental import pallas as pl
from jax.experimental.pallas import tpu as pltpu

MATMUL_DTYPE = jnp.bfloat16   # MXU operands; accumulation + elementwise stay f32
HID = 64                      # hidden width of every nn.Linear in the module
PACK = 2 * HID                # packed actor|critic hidden width (= 128 lanes)
REG = 128                     # lane width of the packed head / output slab


def _round_up(x, m):
    return ((x + m - 1) // m) * m


# --------------------------------------------------------------------------
# Fused kernel: packed MLP + buchi select + evaluate() math
# --------------------------------------------------------------------------
def fused_eval_kernel(slab_ref, idx_ref, mask_ref,
                      w1_ref, b1_ref, w2_ref, b2_ref, w3_ref, b3_ref,
                      out_ref, *, NB, AD, AT):
    f32 = jnp.float32
    TB = out_ref.shape[0]
    OS = NB * AD               # log_std lane offset inside the packed head
    OW = 2 * NB * AD           # switch lane offset (== tanh boundary)

    # ---- pass 1: [actor h1 | critic h1 | tiled action] in one bf16 MXU pass ----
    x = slab_ref[...].astype(MATMUL_DTYPE)
    l1 = jnp.dot(x, w1_ref[...], preferred_element_type=f32) + b1_ref[...]
    h1 = jnp.tanh(l1[:, :PACK])          # tile-aligned slice
    act_t = l1[:, PACK:]                 # action replicated NB times, lanes [0, NB*AD)

    # ---- pass 2: block-diagonal actor/critic hidden layer ----
    h2 = jnp.tanh(jnp.dot(h1.astype(MATMUL_DTYPE), w2_ref[...],
                          preferred_element_type=f32) + b2_ref[...])

    # ---- pass 3: packed heads [mean | log_std | switch | critic] in 128 lanes ----
    head = jnp.dot(h2.astype(MATMUL_DTYPE), w3_ref[...],
                   preferred_element_type=f32) + b3_ref[...]            # (TB, REG)
    col = jax.lax.broadcasted_iota(jnp.int32, (TB, REG), 1)
    head = jnp.where(col < OW, jnp.tanh(head), head)   # tanh only on mean/log_std

    # precomputed per-row lane bases (wrapper-side): no in-kernel integer division
    idx = idx_ref[...]                   # (TB, 8) int32
    base_ad = idx[:, 0:1]                # buchi*AD      (mean lanes)
    base_at = idx[:, 1:2]                # OW + buchi*AT (switch lanes)
    hit_col = idx[:, 2:3]                # OW + buchi*AT + aidx
    crit_col = idx[:, 3:4]               # OC + buchi
    is_mdp = idx[:, 4:5].astype(f32)     # (aidx == 0)

    # ---- diagonal MVN (cov = diag(exp(log_std))); evaluate() semantics:
    #      note log_std is NOT divided by var_denominator in evaluate() ----
    sel_ad = ((col >= base_ad) & (col < base_ad + AD)).astype(f32)
    ls_aligned = pltpu.roll(head, shift=REG - OS, axis=1)   # log_std -> mean lanes
    diff = act_t - head
    inv_var = jnp.exp(-ls_aligned * sel_ad)                 # masked: no overflow risk
    maha = jnp.sum(diff * diff * inv_var * sel_ad, axis=-1, keepdims=True)
    logdet = jnp.sum(ls_aligned * sel_ad, axis=-1, keepdims=True)
    log2pi = f32(np.log(2.0 * np.pi))
    gauss_logprob = -0.5 * (maha + logdet + AD * log2pi)
    gauss_entropy = 0.5 * AD * (1.0 + log2pi) + 0.5 * logdet

    # ---- masked softmax over the selected buchi's AT switch logits ----
    sel_at = (col >= base_at) & (col < base_at + AT)
    sel_at_f = sel_at.astype(f32)
    eps_mask = mask_ref[...]                                # (1, REG) in {0,1}
    masked_vec = head * eps_mask
    maxv = jnp.max(jnp.where(sel_at, masked_vec, f32(-1e30)), axis=-1, keepdims=True)
    exps = jnp.exp(jnp.where(sel_at, masked_vec - maxv, f32(0.0)))
    # torch adds +1e-7 per element, so den > 0 always; the `masked_sums == 0`
    # guard in the original module is dead code and is dropped.
    pe = (exps * eps_mask + 1e-7) * sel_at_f

    den = jnp.sum(pe, axis=-1, keepdims=True)               # shared denominator
    log_den = jnp.log(den)
    inv_den = 1.0 / den                                     # exact (feeds entropy/p0)

    # take_along_dim(probs, action_idxs): log(probs[aidx] + 1e-8) via exact logs
    num = jnp.sum(pe * (col == hit_col).astype(f32), axis=-1, keepdims=True)
    logp_coin = jnp.log(num + 1e-8 * den) - log_den

    # categorical entropy (Categorical re-normalizes; probs already sum to 1)
    log_pe = jnp.log(jnp.where(sel_at, pe, f32(1.0)))
    cat_entropy = log_den - jnp.sum(pe * log_pe, axis=-1, keepdims=True) * inv_den
    p0 = jnp.sum(pe * (col == base_at).astype(f32), axis=-1, keepdims=True) * inv_den

    # ---- critic value at the buchi index ----
    sv = jnp.sum(head * (col == crit_col).astype(f32), axis=-1, keepdims=True)

    logp = logp_coin + gauss_logprob * is_mdp
    ent = cat_entropy + gauss_entropy * p0

    # lane-dense packed output: col0=log_prob, col1=state_value, col2=entropy
    out_ref[...] = jnp.where(col == 0, logp,
                    jnp.where(col == 1, sv,
                     jnp.where(col == 2, ent, f32(0.0))))


# --------------------------------------------------------------------------
# JAX wrapper — mirrors ActorCritic.evaluate()
# --------------------------------------------------------------------------
def evaluate(params, state, buchi, action, action_idxs):
    """Returns (log_probs, state_values, dist_entropy), each shape (B,)."""
    B, S = state.shape
    NB, AD, AT = params['n_buchi'], params['action_dim'], params['action_total']
    SW = params['W1p'].shape[0]
    OW = 2 * NB * AD
    OC = OW + NB * AT

    # Tile sizing: large tiles to amortize per-grid-step overhead, but keep >=2
    # grid steps whenever the batch allows so both v7x TensorCores are used.
    B_pad = _round_up(max(B, 8), 8)
    TB_CAP = 512
    if B_pad >= 16:
        TB = min(TB_CAP, _round_up(pl.cdiv(B_pad, 2), 8))
    else:
        TB = B_pad
    B_pad = _round_up(B_pad, TB)
    grid = (B_pad // TB,)

    # one dense f32 [state | action] slab + one small int32 index slab
    slab = jnp.concatenate([state.astype(jnp.float32),
                            action.astype(jnp.float32)], axis=1)
    slab = jnp.pad(slab, ((0, B_pad - B), (0, SW - (S + AD))))

    b_i = buchi.reshape(B).astype(jnp.int32)
    a_i = action_idxs.reshape(B).astype(jnp.int32)
    z = jnp.zeros_like(b_i)
    islab = jnp.stack([b_i * AD, OW + b_i * AT, OW + b_i * AT + a_i,
                       OC + b_i, (a_i == 0).astype(jnp.int32), z, z, z], axis=1)
    islab = jnp.pad(islab, ((0, B_pad - B), (0, 0)))

    def row_spec(w):
        return pl.BlockSpec((TB, w), lambda i: (i, 0))

    def full_spec(r, c):
        return pl.BlockSpec((r, c), lambda i: (0, 0))

    kernel = functools.partial(fused_eval_kernel, NB=NB, AD=AD, AT=AT)
    packed = pl.pallas_call(
        kernel,
        out_shape=jax.ShapeDtypeStruct((B_pad, REG), jnp.float32),
        grid_spec=pltpu.PrefetchScalarGridSpec(
            num_scalar_prefetch=0,
            grid=grid,
            in_specs=[
                row_spec(SW),                       # [state | action] slab
                row_spec(8),                        # int32 lane-base slab
                full_spec(1, REG),                  # eps mask (switch offsets)
                full_spec(SW, 2 * PACK), full_spec(1, 2 * PACK),   # pass 1
                full_spec(PACK, PACK), full_spec(1, PACK),         # pass 2
                full_spec(PACK, REG), full_spec(1, REG),           # packed heads
            ],
            out_specs=row_spec(REG),
        ),
        compiler_params=pltpu.CompilerParams(
            dimension_semantics=("parallel",),
            vmem_limit_bytes=32 * 1024 * 1024),
    )(slab, islab, params['mask_pad'],
      params['W1p'], params['b1p'], params['W2p'], params['b2p'],
      params['W3p'], params['b3p'])

    return packed[:B, 0], packed[:B, 1], packed[:B, 2]


# --------------------------------------------------------------------------
# Deterministic parameter init (mimics nn.Linear default uniform init)
# --------------------------------------------------------------------------
def _linear(key, fan_in, fan_out):
    k1, k2 = jax.random.split(key)
    bound = 1.0 / np.sqrt(fan_in)
    w = jax.random.uniform(k1, (fan_in, fan_out), jnp.float32, -bound, bound)
    b = jax.random.uniform(k2, (1, fan_out), jnp.float32, -bound, bound)
    # store weights at bf16-representable values so the bf16 MXU operands and
    # the f32 numpy reference see identical effective parameters
    w = w.astype(jnp.bfloat16).astype(jnp.float32)
    return w, b


def init_params(key, S, NB, AD, AT):
    keys = jax.random.split(key, 7)
    w1, b1 = _linear(keys[0], S, HID)
    w2, b2 = _linear(keys[1], HID, HID)
    wm, bm = _linear(keys[2], HID, NB * AD)
    ws, bs = _linear(keys[3], HID, NB * AD)
    wa, ba = _linear(keys[4], HID, NB * AT)
    ba = ba.at[0, ::AT].set(5.0)                 # bias[::action_total] = 5.0
    wc1, bc1 = _linear(keys[5], S, HID)
    wc2, bc2 = _linear(keys[6], HID, HID)
    kc3 = jax.random.fold_in(key, 99)
    wc3, bc3 = _linear(kc3, HID, NB)

    # mask: eps = 1 + action_dim[buchi].n when that buchi has discrete eps-actions
    eps_per_buchi = [1, 3, 2, 4]                 # synthetic, values <= AT
    mask = np.ones((NB, AT), dtype=np.float32)
    if AT > 1:
        for b in range(NB):
            mask[b, eps_per_buchi[b % len(eps_per_buchi)]:] = 0.0

    # head lane offsets inside ONE 128-lane region
    OM, OSS, OW, OC = 0, NB * AD, 2 * NB * AD, 2 * NB * AD + NB * AT
    assert OC + NB <= REG, "packed head does not fit in 128 lanes"
    assert NB * AD <= PACK

    SW = _round_up(S + AD, 8)

    # pass 1: [actor h1 | critic h1 | tiled action]  (SW, 256)
    W1p = np.zeros((SW, 2 * PACK), np.float32)
    W1p[:S, 0:HID] = np.asarray(w1)
    W1p[:S, HID:PACK] = np.asarray(wc1)
    for j in range(AD):
        for g in range(NB):
            W1p[S + j, PACK + g * AD + j] = 1.0
    b1p = np.zeros((1, 2 * PACK), np.float32)
    b1p[0, 0:HID] = np.asarray(b1)[0]
    b1p[0, HID:PACK] = np.asarray(bc1)[0]

    # pass 2: block-diagonal actor/critic hidden layer
    W2p = np.zeros((PACK, PACK), np.float32)
    W2p[:HID, :HID] = np.asarray(w2)
    W2p[HID:, HID:] = np.asarray(wc2)
    b2p = np.zeros((1, PACK), np.float32)
    b2p[0, :HID] = np.asarray(b2)[0]
    b2p[0, HID:] = np.asarray(bc2)[0]

    # pass 3: packed heads in a single 128-lane region
    W3p = np.zeros((PACK, REG), np.float32)
    W3p[:HID, OM:OM + NB * AD] = np.asarray(wm)
    W3p[:HID, OSS:OSS + NB * AD] = np.asarray(ws)
    W3p[:HID, OW:OW + NB * AT] = np.asarray(wa)
    W3p[HID:, OC:OC + NB] = np.asarray(wc3)
    b3p = np.zeros((1, REG), np.float32)
    b3p[0, OM:OM + NB * AD] = np.asarray(bm)[0]
    b3p[0, OSS:OSS + NB * AD] = np.asarray(bs)[0]
    b3p[0, OW:OW + NB * AT] = np.asarray(ba)[0]
    b3p[0, OC:OC + NB] = np.asarray(bc3)[0]

    mask_pad = np.zeros((1, REG), np.float32)
    mask_pad[0, OW:OW + NB * AT] = mask.reshape(-1)

    return dict(
        n_buchi=NB, action_dim=AD, action_total=AT,
        # raw layers (numpy reference)
        w1=w1, b1=b1, w2=w2, b2=b2, wm=wm, bm=bm, ws=ws, bs=bs,
        wa=wa, ba=ba, wc1=wc1, bc1=bc1, wc2=wc2, bc2=bc2, wc3=wc3, bc3=bc3,
        mask=jnp.asarray(mask),
        # packed kernel operands (weights stored as bf16 matmul operands)
        W1p=jnp.asarray(W1p).astype(MATMUL_DTYPE), b1p=jnp.asarray(b1p),
        W2p=jnp.asarray(W2p).astype(MATMUL_DTYPE), b2p=jnp.asarray(b2p),
        W3p=jnp.asarray(W3p).astype(MATMUL_DTYPE), b3p=jnp.asarray(b3p),
        mask_pad=jnp.asarray(mask_pad))


# --------------------------------------------------------------------------
# Pure-numpy reference of ActorCritic.evaluate() for a sanity check
# --------------------------------------------------------------------------
def reference_evaluate(p, state, buchi, action, action_idxs):
    def lin(x, w, b):
        return x @ np.asarray(w) + np.asarray(b)

    NB, AD, AT = p['n_buchi'], p['action_dim'], p['action_total']
    B = state.shape[0]
    h1 = np.tanh(lin(state, p['w1'], p['b1']))
    body = np.tanh(lin(h1, p['w2'], p['b2']))
    mean = np.tanh(lin(body, p['wm'], p['bm'])).reshape(B, NB, AD)
    logstd = np.tanh(lin(body, p['ws'], p['bs'])).reshape(B, NB, AD)
    switch = lin(body, p['wa'], p['ba']).reshape(B, NB, AT)
    c = np.tanh(lin(state, p['wc1'], p['bc1']))
    c = np.tanh(lin(c, p['wc2'], p['bc2']))
    critic = lin(c, p['wc3'], p['bc3'])

    b_idx = buchi[:, 0, 0]
    rows = np.arange(B)
    a_mean = mean[rows, b_idx]
    a_lstd = logstd[rows, b_idx]
    a_sw = switch[rows, b_idx]
    msk = np.asarray(p['mask'])[b_idx]

    mv = a_sw * msk
    mx = mv.max(-1, keepdims=True)
    me = np.exp(mv - mx) * msk + 1e-7
    ms = me.sum(-1, keepdims=True)
    ms = ms + (ms == 0)
    probs = me / ms

    var = np.exp(a_lstd)                         # cov = diag(exp(log_std))
    log2pi = np.log(2 * np.pi)
    maha = ((action - a_mean) ** 2 / var).sum(-1)
    logdet = a_lstd.sum(-1)
    glp = -0.5 * (maha + logdet + AD * log2pi)
    gent = 0.5 * AD * (1 + log2pi) + 0.5 * logdet

    pn = probs / probs.sum(-1, keepdims=True)
    cent = -(pn * np.log(pn)).sum(-1)

    sp = probs[rows, action_idxs] + 1e-8
    logp = np.log(sp) + glp * (action_idxs == 0)
    ent = cent + gent * probs[:, 0]
    sv = critic[rows, b_idx]
    return logp, sv, ent


def _check(params, state, buchi, action, action_idxs):
    lp, sv, ent = evaluate(params, state, buchi, action, action_idxs)
    jax.block_until_ready((lp, sv, ent))
    r_lp, r_sv, r_ent = reference_evaluate(
        params, np.asarray(state), np.asarray(buchi), np.asarray(action),
        np.asarray(action_idxs))
    B = state.shape[0]
    assert lp.shape == (B,) and sv.shape == (B,) and ent.shape == (B,)
    assert np.all(np.isfinite(np.asarray(lp)))
    # tolerance accounts for bf16 intermediate-activation casts (h1/h2) in the MXU path
    np.testing.assert_allclose(np.asarray(lp), r_lp, rtol=3e-2, atol=5e-2)
    np.testing.assert_allclose(np.asarray(sv), r_sv, rtol=3e-2, atol=5e-2)
    np.testing.assert_allclose(np.asarray(ent), r_ent, rtol=3e-2, atol=5e-2)


# --------------------------------------------------------------------------
if __name__ == "__main__":
    S, NB, AD, AT = 8, 4, 3, 4   # state_dim, buchi states, cont. action dim, total actions

    key = jax.random.PRNGKey(0)
    kp, ks, kb, ka, ki = jax.random.split(key, 5)
    params = init_params(kp, S, NB, AD, AT)

    def make_inputs(k, B):
        k1, k2, k3, k4 = jax.random.split(k, 4)
        st = jax.random.normal(k1, (B, S), jnp.float32)
        st = st.astype(jnp.bfloat16).astype(jnp.float32)      # bf16-exact test inputs
        bu = jax.random.randint(k2, (B, 1, 1), 0, NB, jnp.int32)
        ac = jnp.clip(jax.random.normal(k3, (B, AD), jnp.float32), -1.0, 1.0)
        ac = ac.astype(jnp.bfloat16).astype(jnp.float32)
        ai = jax.random.randint(k4, (B,), 0, AT, jnp.int32)
        return st, bu, ac, ai

    # small batch (single grid step)
    _check(params, *make_inputs(ks, 8))
    # larger batch exercising padding + a 2-step "parallel" grid (v7x megacore path)
    _check(params, *make_inputs(kb, 40))

    print("KERNEL_OK")
</pallas_src>

<mosaic_0001>
module attributes {stable_mosaic.version = 11 : i64} {
  func.func @fused_eval_kernel(%arg0: i32, %arg1: memref<8x16xf32, #tpu.memory_space<vmem>>, %arg2: memref<8x8xi32, #tpu.memory_space<vmem>>, %arg3: memref<1x128xf32, #tpu.memory_space<vmem>>, %arg4: memref<16x256xbf16, #tpu.memory_space<vmem>>, %arg5: memref<1x256xf32, #tpu.memory_space<vmem>>, %arg6: memref<128x128xbf16, #tpu.memory_space<vmem>>, %arg7: memref<1x128xf32, #tpu.memory_space<vmem>>, %arg8: memref<128x128xbf16, #tpu.memory_space<vmem>>, %arg9: memref<1x128xf32, #tpu.memory_space<vmem>>, %arg10: memref<8x128xf32, #tpu.memory_space<vmem>>) attributes {dimension_semantics = [#tpu.dimension_semantics<parallel>], iteration_bounds = array<i64: 1>, scalar_prefetch = 0 : i64, scratch_operands = 0 : i64, tpu.core_type = #tpu.core_type<tc>, window_params = [{transform_indices = @transform_0, window_bounds = array<i64: 8, 16>}, {transform_indices = @transform_1, window_bounds = array<i64: 8, 8>}, {pipeline_mode = #tpu.pipeline_mode<synchronous>, transform_indices = @transform_2, window_bounds = array<i64: 1, 128>}, {pipeline_mode = #tpu.pipeline_mode<synchronous>, transform_indices = @transform_3, window_bounds = array<i64: 16, 256>}, {pipeline_mode = #tpu.pipeline_mode<synchronous>, transform_indices = @transform_4, window_bounds = array<i64: 1, 256>}, {pipeline_mode = #tpu.pipeline_mode<synchronous>, transform_indices = @transform_5, window_bounds = array<i64: 128, 128>}, {pipeline_mode = #tpu.pipeline_mode<synchronous>, transform_indices = @transform_6, window_bounds = array<i64: 1, 128>}, {pipeline_mode = #tpu.pipeline_mode<synchronous>, transform_indices = @transform_7, window_bounds = array<i64: 128, 128>}, {pipeline_mode = #tpu.pipeline_mode<synchronous>, transform_indices = @transform_8, window_bounds = array<i64: 1, 128>}, {transform_indices = @transform_9, window_bounds = array<i64: 8, 128>}]} {
    %c0 = arith.constant 0 : index
    %c0_0 = arith.constant 0 : index
    %0 = vector.load %arg1[%c0, %c0_0] : memref<8x16xf32, #tpu.memory_space<vmem>>, vector<8x16xf32>
    %1 = arith.truncf %0 : vector<8x16xf32> to vector<8x16xbf16>
    %c0_1 = arith.constant 0 : index
    %c0_2 = arith.constant 0 : index
    %2 = vector.load %arg4[%c0_1, %c0_2] : memref<16x256xbf16, #tpu.memory_space<vmem>>, vector<16x256xbf16>
    %cst = arith.constant dense<0.000000e+00> : vector<8x256xf32>
    %3 = tpu.matmul %1, %2, %cst {dimension_numbers = #tpu.dot_dimension_numbers<[1], [0], [0], [1], [0, 0, 1, 1], [], []>} : vector<8x16xbf16>, vector<16x256xbf16>, vector<8x256xf32> -> vector<8x256xf32>
    %c0_3 = arith.constant 0 : index
    %c0_4 = arith.constant 0 : index
    %4 = vector.load %arg5[%c0_3, %c0_4] : memref<1x256xf32, #tpu.memory_space<vmem>>, vector<1x256xf32>
    %5 = vector.broadcast %4 : vector<1x256xf32> to vector<8x256xf32>
    %6 = arith.addf %3, %5 : vector<8x256xf32>
    %7 = vector.extract_strided_slice %6 {offsets = [0, 0], sizes = [8, 128], strides = [1, 1]} : vector<8x256xf32> to vector<8x128xf32>
    %8 = math.tanh %7 : vector<8x128xf32>
    %9 = vector.extract_strided_slice %6 {offsets = [0, 128], sizes = [8, 128], strides = [1, 1]} : vector<8x256xf32> to vector<8x128xf32>
    %10 = arith.truncf %8 : vector<8x128xf32> to vector<8x128xbf16>
    %c0_5 = arith.constant 0 : index
    %c0_6 = arith.constant 0 : index
    %11 = vector.load %arg6[%c0_5, %c0_6] : memref<128x128xbf16, #tpu.memory_space<vmem>>, vector<128x128xbf16>
    %cst_7 = arith.constant dense<0.000000e+00> : vector<8x128xf32>
    %12 = tpu.matmul %10, %11, %cst_7 {dimension_numbers = #tpu.dot_dimension_numbers<[1], [0], [0], [1], [0, 0, 1, 1], [], []>} : vector<8x128xbf16>, vector<128x128xbf16>, vector<8x128xf32> -> vector<8x128xf32>
    %c0_8 = arith.constant 0 : index
    %c0_9 = arith.constant 0 : index
    %13 = vector.load %arg7[%c0_8, %c0_9] : memref<1x128xf32, #tpu.memory_space<vmem>>, vector<1x128xf32>
    %14 = vector.broadcast %13 : vector<1x128xf32> to vector<8x128xf32>
    %15 = arith.addf %12, %14 : vector<8x128xf32>
    %16 = math.tanh %15 : vector<8x128xf32>
    %17 = arith.truncf %16 : vector<8x128xf32> to vector<8x128xbf16>
    %c0_10 = arith.constant 0 : index
    %c0_11 = arith.constant 0 : index
    %18 = vector.load %arg8[%c0_10, %c0_11] : memref<128x128xbf16, #tpu.memory_space<vmem>>, vector<128x128xbf16>
    %cst_12 = arith.constant dense<0.000000e+00> : vector<8x128xf32>
    %19 = tpu.matmul %17, %18, %cst_12 {dimension_numbers = #tpu.dot_dimension_numbers<[1], [0], [0], [1], [0, 0, 1, 1], [], []>} : vector<8x128xbf16>, vector<128x128xbf16>, vector<8x128xf32> -> vector<8x128xf32>
    %c0_13 = arith.constant 0 : index
    %c0_14 = arith.constant 0 : index
    %20 = vector.load %arg9[%c0_13, %c0_14] : memref<1x128xf32, #tpu.memory_space<vmem>>, vector<1x128xf32>
    %21 = vector.broadcast %20 : vector<1x128xf32> to vector<8x128xf32>
    %22 = arith.addf %19, %21 : vector<8x128xf32>
    %23 = tpu.iota {dimensions = array<i32: 1>} : vector<8x128xi32>
    %c24_i32 = arith.constant 24 : i32
    %24 = vector.broadcast %c24_i32 : i32 to vector<8x128xi32>
    %25 = arith.cmpi slt, %23, %24 : vector<8x128xi32>
    %26 = math.tanh %22 : vector<8x128xf32>
    %27 = arith.select %25, %26, %22 : vector<8x128xi1>, vector<8x128xf32>
    %c0_15 = arith.constant 0 : index
    %c0_16 = arith.constant 0 : index
    %28 = vector.load %arg2[%c0_15, %c0_16] : memref<8x8xi32, #tpu.memory_space<vmem>>, vector<8x8xi32>
    %29 = vector.extract_strided_slice %28 {offsets = [0, 0], sizes = [8, 1], strides = [1, 1]} : vector<8x8xi32> to vector<8x1xi32>
    %30 = vector.extract_strided_slice %28 {offsets = [0, 1], sizes = [8, 1], strides = [1, 1]} : vector<8x8xi32> to vector<8x1xi32>
    %31 = vector.extract_strided_slice %28 {offsets = [0, 2], sizes = [8, 1], strides = [1, 1]} : vector<8x8xi32> to vector<8x1xi32>
    %32 = vector.extract_strided_slice %28 {offsets = [0, 3], sizes = [8, 1], strides = [1, 1]} : vector<8x8xi32> to vector<8x1xi32>
    %33 = vector.extract_strided_slice %28 {offsets = [0, 4], sizes = [8, 1], strides = [1, 1]} : vector<8x8xi32> to vector<8x1xi32>
    %34 = arith.sitofp %33 : vector<8x1xi32> to vector<8x1xf32>
    %35 = vector.broadcast %29 : vector<8x1xi32> to vector<8x128xi32>
    %36 = arith.cmpi sge, %23, %35 : vector<8x128xi32>
    %c3_i32 = arith.constant 3 : i32
    %37 = vector.broadcast %c3_i32 : i32 to vector<8x1xi32>
    %38 = arith.addi %29, %37 : vector<8x1xi32>
    %39 = vector.broadcast %38 : vector<8x1xi32> to vector<8x128xi32>
    %40 = arith.cmpi slt, %23, %39 : vector<8x128xi32>
    %41 = arith.andi %36, %40 : vector<8x128xi1>
    %42 = arith.extui %41 : vector<8x128xi1> to vector<8x128xi32>
    %43 = arith.sitofp %42 : vector<8x128xi32> to vector<8x128xf32>
    %c116_i32 = arith.constant 116 : i32
    %44 = tpu.dynamic_rotate %27 by %c116_i32 dim 1 : vector<8x128xf32>, i32 -> vector<8x128xf32>
    %45 = arith.subf %9, %27 : vector<8x128xf32>
    %cst_17 = arith.constant 0.000000e+00 : f32
    %46 = vector.broadcast %cst_17 : f32 to vector<8x128xf32>
    %47 = arith.subf %46, %44 : vector<8x128xf32>
    %48 = arith.mulf %47, %43 : vector<8x128xf32>
    %49 = math.exp %48 : vector<8x128xf32>
    %50 = arith.mulf %45, %45 : vector<8x128xf32>
    %51 = arith.mulf %50, %49 : vector<8x128xf32>
    %52 = arith.mulf %51, %43 : vector<8x128xf32>
    %cst_18 = arith.constant dense<0.000000e+00> : vector<8xf32>
    %53 = vector.multi_reduction <add>, %52, %cst_18 [1] : vector<8x128xf32> to vector<8xf32>
    %54 = vector.shape_cast %53 : vector<8xf32> to vector<8x1xf32>
    %55 = arith.mulf %44, %43 : vector<8x128xf32>
    %cst_19 = arith.constant dense<0.000000e+00> : vector<8xf32>
    %56 = vector.multi_reduction <add>, %55, %cst_19 [1] : vector<8x128xf32> to vector<8xf32>
    %57 = vector.shape_cast %56 : vector<8xf32> to vector<8x1xf32>
    %58 = arith.addf %54, %57 : vector<8x1xf32>
    %cst_20 = arith.constant 3.000000e+00 : f32
    %cst_21 = arith.constant 1.83787704 : f32
    %59 = arith.mulf %cst_20, %cst_21 : f32
    %60 = vector.broadcast %59 : f32 to vector<8x1xf32>
    %61 = arith.addf %58, %60 : vector<8x1xf32>
    %cst_22 = arith.constant -5.000000e-01 : f32
    %62 = vector.broadcast %cst_22 : f32 to vector<8x1xf32>
    %63 = arith.mulf %62, %61 : vector<8x1xf32>
    %cst_23 = arith.constant 1.000000e+00 : f32
    %cst_24 = arith.constant 1.83787704 : f32
    %64 = arith.addf %cst_23, %cst_24 : f32
    %cst_25 = arith.constant 1.500000e+00 : f32
    %65 = arith.mulf %cst_25, %64 : f32
    %cst_26 = arith.constant 5.000000e-01 : f32
    %66 = vector.broadcast %cst_26 : f32 to vector<8x1xf32>
    %67 = arith.mulf %66, %57 : vector<8x1xf32>
    %68 = vector.broadcast %65 : f32 to vector<8x1xf32>
    %69 = arith.addf %68, %67 : vector<8x1xf32>
    %70 = vector.broadcast %30 : vector<8x1xi32> to vector<8x128xi32>
    %71 = arith.cmpi sge, %23, %70 : vector<8x128xi32>
    %c4_i32 = arith.constant 4 : i32
    %72 = vector.broadcast %c4_i32 : i32 to vector<8x1xi32>
    %73 = arith.addi %30, %72 : vector<8x1xi32>
    %74 = vector.broadcast %73 : vector<8x1xi32> to vector<8x128xi32>
    %75 = arith.cmpi slt, %23, %74 : vector<8x128xi32>
    %76 = arith.andi %71, %75 : vector<8x128xi1>
    %77 = arith.extui %76 : vector<8x128xi1> to vector<8x128xi32>
    %78 = arith.sitofp %77 : vector<8x128xi32> to vector<8x128xf32>
    %c0_27 = arith.constant 0 : index
    %c0_28 = arith.constant 0 : index
    %79 = vector.load %arg3[%c0_27, %c0_28] : memref<1x128xf32, #tpu.memory_space<vmem>>, vector<1x128xf32>
    %80 = vector.broadcast %79 : vector<1x128xf32> to vector<8x128xf32>
    %81 = arith.mulf %27, %80 : vector<8x128xf32>
    %cst_29 = arith.constant -1.000000e+30 : f32
    %82 = vector.broadcast %cst_29 : f32 to vector<8x128xf32>
    %83 = arith.select %76, %81, %82 : vector<8x128xi1>, vector<8x128xf32>
    %cst_30 = arith.constant dense<0xFF800000> : vector<8xf32>
    %84 = vector.multi_reduction <maximumf>, %83, %cst_30 [1] : vector<8x128xf32> to vector<8xf32>
    %85 = vector.shape_cast %84 : vector<8xf32> to vector<8x1xf32>
    %86 = vector.broadcast %85 : vector<8x1xf32> to vector<8x128xf32>
    %87 = arith.subf %81, %86 : vector<8x128xf32>
    %cst_31 = arith.constant 0.000000e+00 : f32
    %88 = vector.broadcast %cst_31 : f32 to vector<8x128xf32>
    %89 = arith.select %76, %87, %88 : vector<8x128xi1>, vector<8x128xf32>
    %90 = math.exp %89 : vector<8x128xf32>
    %91 = vector.broadcast %79 : vector<1x128xf32> to vector<8x128xf32>
    %92 = arith.mulf %90, %91 : vector<8x128xf32>
    %cst_32 = arith.constant 1.000000e-07 : f32
    %93 = vector.broadcast %cst_32 : f32 to vector<8x128xf32>
    %94 = arith.addf %92, %93 : vector<8x128xf32>
    %95 = arith.mulf %94, %78 : vector<8x128xf32>
    %cst_33 = arith.constant dense<0.000000e+00> : vector<8xf32>
    %96 = vector.multi_reduction <add>, %95, %cst_33 [1] : vector<8x128xf32> to vector<8xf32>
    %97 = vector.shape_cast %96 : vector<8xf32> to vector<8x1xf32>
    %98 = math.log %97 : vector<8x1xf32>
    %cst_34 = arith.constant 1.000000e+00 : f32
    %99 = vector.broadcast %cst_34 : f32 to vector<8x1xf32>
    %100 = arith.divf %99, %97 : vector<8x1xf32>
    %101 = vector.broadcast %31 : vector<8x1xi32> to vector<8x128xi32>
    %102 = arith.cmpi eq, %23, %101 : vector<8x128xi32>
    %103 = arith.extui %102 : vector<8x128xi1> to vector<8x128xi32>
    %104 = arith.sitofp %103 : vector<8x128xi32> to vector<8x128xf32>
    %105 = arith.mulf %95, %104 : vector<8x128xf32>
    %cst_35 = arith.constant dense<0.000000e+00> : vector<8xf32>
    %106 = vector.multi_reduction <add>, %105, %cst_35 [1] : vector<8x128xf32> to vector<8xf32>
    %107 = vector.shape_cast %106 : vector<8xf32> to vector<8x1xf32>
    %cst_36 = arith.constant 9.99999993E-9 : f32
    %108 = vector.broadcast %cst_36 : f32 to vector<8x1xf32>
    %109 = arith.mulf %108, %97 : vector<8x1xf32>
    %110 = arith.addf %107, %109 : vector<8x1xf32>
    %111 = math.log %110 : vector<8x1xf32>
    %112 = arith.subf %111, %98 : vector<8x1xf32>
    %cst_37 = arith.constant 1.000000e+00 : f32
    %113 = vector.broadcast %cst_37 : f32 to vector<8x128xf32>
    %114 = arith.select %76, %95, %113 : vector<8x128xi1>, vector<8x128xf32>
    %115 = math.log %114 : vector<8x128xf32>
    %116 = arith.mulf %95, %115 : vector<8x128xf32>
    %cst_38 = arith.constant dense<0.000000e+00> : vector<8xf32>
    %117 = vector.multi_reduction <add>, %116, %cst_38 [1] : vector<8x128xf32> to vector<8xf32>
    %118 = vector.shape_cast %117 : vector<8xf32> to vector<8x1xf32>
    %119 = arith.mulf %118, %100 : vector<8x1xf32>
    %120 = arith.subf %98, %119 : vector<8x1xf32>
    %121 = vector.broadcast %30 : vector<8x1xi32> to vector<8x128xi32>
    %122 = arith.cmpi eq, %23, %121 : vector<8x128xi32>
    %123 = arith.extui %122 : vector<8x128xi1> to vector<8x128xi32>
    %124 = arith.sitofp %123 : vector<8x128xi32> to vector<8x128xf32>
    %125 = arith.mulf %95, %124 : vector<8x128xf32>
    %cst_39 = arith.constant dense<0.000000e+00> : vector<8xf32>
    %126 = vector.multi_reduction <add>, %125, %cst_39 [1] : vector<8x128xf32> to vector<8xf32>
    %127 = vector.shape_cast %126 : vector<8xf32> to vector<8x1xf32>
    %128 = arith.mulf %127, %100 : vector<8x1xf32>
    %129 = vector.broadcast %32 : vector<8x1xi32> to vector<8x128xi32>
    %130 = arith.cmpi eq, %23, %129 : vector<8x128xi32>
    %131 = arith.extui %130 : vector<8x128xi1> to vector<8x128xi32>
    %132 = arith.sitofp %131 : vector<8x128xi32> to vector<8x128xf32>
    %133 = arith.mulf %27, %132 : vector<8x128xf32>
    %cst_40 = arith.constant dense<0.000000e+00> : vector<8xf32>
    %134 = vector.multi_reduction <add>, %133, %cst_40 [1] : vector<8x128xf32> to vector<8xf32>
    %135 = vector.shape_cast %134 : vector<8xf32> to vector<8x1xf32>
    %136 = arith.mulf %63, %34 : vector<8x1xf32>
    %137 = arith.addf %112, %136 : vector<8x1xf32>
    %138 = arith.mulf %69, %128 : vector<8x1xf32>
    %139 = arith.addf %120, %138 : vector<8x1xf32>
    %c0_i32 = arith.constant 0 : i32
    %140 = vector.broadcast %c0_i32 : i32 to vector<8x128xi32>
    %141 = arith.cmpi eq, %23, %140 : vector<8x128xi32>
    %c1_i32 = arith.constant 1 : i32
    %142 = vector.broadcast %c1_i32 : i32 to vector<8x128xi32>
    %143 = arith.cmpi eq, %23, %142 : vector<8x128xi32>
    %c2_i32 = arith.constant 2 : i32
    %144 = vector.broadcast %c2_i32 : i32 to vector<8x128xi32>
    %145 = arith.cmpi eq, %23, %144 : vector<8x128xi32>
    %cst_41 = arith.constant 0.000000e+00 : f32
    %146 = vector.shape_cast %139 : vector<8x1xf32> to vector<8x1xf32>
    %147 = vector.broadcast %146 : vector<8x1xf32> to vector<8x128xf32>
    %148 = vector.broadcast %cst_41 : f32 to vector<8x128xf32>
    %149 = arith.select %145, %147, %148 : vector<8x128xi1>, vector<8x128xf32>
    %150 = vector.shape_cast %135 : vector<8x1xf32> to vector<8x1xf32>
    %151 = vector.broadcast %150 : vector<8x1xf32> to vector<8x128xf32>
    %152 = arith.select %143, %151, %149 : vector<8x128xi1>, vector<8x128xf32>
    %153 = vector.shape_cast %137 : vector<8x1xf32> to vector<8x1xf32>
    %154 = vector.broadcast %153 : vector<8x1xf32> to vector<8x128xf32>
    %155 = arith.select %141, %154, %152 : vector<8x128xi1>, vector<8x128xf32>
    %c0_42 = arith.constant 0 : index
    %c0_43 = arith.constant 0 : index
    %156 = vector.load %arg10[%c0_42, %c0_43] : memref<8x128xf32, #tpu.memory_space<vmem>>, vector<8x128xf32>
    tpu.vector_store %arg10[%c0_42, %c0_43], %155 {strides = array<i32>} : memref<8x128xf32, #tpu.memory_space<vmem>>, vector<8x128xf32>,
    return
  }
  func.func @transform_0(%arg0: i32) -> (i32, i32) {
    %c0_i32 = arith.constant 0 : i32
    %c0_i32_0 = arith.constant 0 : i32
    return %arg0, %c0_i32 : i32, i32
  }
  func.func @transform_1(%arg0: i32) -> (i32, i32) {
    %c0_i32 = arith.constant 0 : i32
    %c0_i32_0 = arith.constant 0 : i32
    return %arg0, %c0_i32 : i32, i32
  }
  func.func @transform_2(%arg0: i32) -> (i32, i32) {
    %c0_i32 = arith.constant 0 : i32
    %c0_i32_0 = arith.constant 0 : i32
    %c0_i32_1 = arith.constant 0 : i32
    return %c0_i32, %c0_i32_0 : i32, i32
  }
  func.func @transform_3(%arg0: i32) -> (i32, i32) {
    %c0_i32 = arith.constant 0 : i32
    %c0_i32_0 = arith.constant 0 : i32
    %c0_i32_1 = arith.constant 0 : i32
    return %c0_i32, %c0_i32_0 : i32, i32
  }
  func.func @transform_4(%arg0: i32) -> (i32, i32) {
    %c0_i32 = arith.constant 0 : i32
    %c0_i32_0 = arith.constant 0 : i32
    %c0_i32_1 = arith.constant 0 : i32
    return %c0_i32, %c0_i32_0 : i32, i32
  }
  func.func @transform_5(%arg0: i32) -> (i32, i32) {
    %c0_i32 = arith.constant 0 : i32
    %c0_i32_0 = arith.constant 0 : i32
    %c0_i32_1 = arith.constant 0 : i32
    return %c0_i32, %c0_i32_0 : i32, i32
  }
  func.func @transform_6(%arg0: i32) -> (i32, i32) {
    %c0_i32 = arith.constant 0 : i32
    %c0_i32_0 = arith.constant 0 : i32
    %c0_i32_1 = arith.constant 0 : i32
    return %c0_i32, %c0_i32_0 : i32, i32
  }
  func.func @transform_7(%arg0: i32) -> (i32, i32) {
    %c0_i32 = arith.constant 0 : i32
    %c0_i32_0 = arith.constant 0 : i32
    %c0_i32_1 = arith.constant 0 : i32
    return %c0_i32, %c0_i32_0 : i32, i32
  }
  func.func @transform_8(%arg0: i32) -> (i32, i32) {
    %c0_i32 = arith.constant 0 : i32
    %c0_i32_0 = arith.constant 0 : i32
    %c0_i32_1 = arith.constant 0 : i32
    return %c0_i32, %c0_i32_0 : i32, i32
  }
  func.func @transform_9(%arg0: i32) -> (i32, i32) {
    %c0_i32 = arith.constant 0 : i32
    %c0_i32_0 = arith.constant 0 : i32
    return %arg0, %c0_i32 : i32, i32
  }
}

</mosaic_0001>

<llo_original>
// kernel: tpu_custom_call.1
$region0: #{tpu_custom_call.1}
  #allocation0 [shape = 'u32[]', space=smem, size = 0x4, offset = 0x4, fixed_abs, tag = 'smem constant byte address 0x4 - core index']
  #allocation1 [shape = 'u32[144,128]{1,0:T(1,128)}', space=vmem, size = 0x12000, scoped, tag = 'internal scratch']
  %s0 = inlined_call_operand.hbm [shape: f32[8,16], index: 0, kind: input, shape index: {}]
  %s1 = inlined_call_operand.hbm [shape: s32[8,8], index: 1, kind: input, shape index: {}]
  %s2 = inlined_call_operand.vmem [shape: f32[1,128], index: 2, kind: input, shape index: {}]
  %s3 = inlined_call_operand.hbm [shape: bf16[16,256], index: 3, kind: input, shape index: {}]
  %s4 = inlined_call_operand.vmem [shape: f32[1,256], index: 4, kind: input, shape index: {}]
  %s5 = inlined_call_operand.hbm [shape: bf16[128,128], index: 5, kind: input, shape index: {}]
  %s6 = inlined_call_operand.vmem [shape: f32[1,128], index: 6, kind: input, shape index: {}]
  %s7 = inlined_call_operand.hbm [shape: bf16[128,128], index: 7, kind: input, shape index: {}]
  %s8 = inlined_call_operand.vmem [shape: f32[1,128], index: 8, kind: input, shape index: {}]
  %s9 = inlined_call_operand.hbm [shape: f32[8,128], index: 9, kind: output, shape index: {}]
  %s10 = sld [smem:[#allocation0]]
  $region66: #{tpu_custom_call.1} parent=0
    _
  %s12 = ssub.s32 1, %s10
  %s13 = scalar_select 0, %s12, %s10
  $region1: #{tpu_custom_call.1} parent=0
    #allocation2 [shape = 'u8[4096]{0}', space=vmem, size = 0x1000, scoped, tag = 'input window, operand 0, single buffered']
    #allocation3 [shape = 's32[1]{0}', space=sflag, size = 0x4, scoped, tag = 'scoped memory for tpu_custom_call.1']
    #allocation4 [shape = 's32[1]{0}', space=sflag, size = 0x4, scoped, tag = 'scoped memory for tpu_custom_call.1']
    #allocation5 [shape = 'u8[4096]{0}', space=vmem, size = 0x1000, scoped, tag = 'input window, operand 1, single buffered']
    #allocation6 [shape = 's32[1]{0}', space=sflag, size = 0x4, scoped, tag = 'scoped memory for tpu_custom_call.1']
    #allocation7 [shape = 'u8[8192]{0}', space=vmem, size = 0x2000, scoped, tag = 'input window, operand 3, single buffered']
    #allocation8 [shape = 'u8[32768]{0}', space=vmem, size = 0x8000, scoped, tag = 'input window, operand 5, single buffered']
    #allocation9 [shape = 's32[1]{0}', space=sflag, size = 0x4, scoped, tag = 'scoped memory for tpu_custom_call.1']
    #allocation10 [shape = 'u8[32768]{0}', space=vmem, size = 0x8000, scoped, tag = 'input window, operand 7, single buffered']
    #allocation11 [shape = 'u8[4096]{0}', space=vmem, size = 0x1000, scoped, tag = 'output window, operand 0, single buffered']
    %14 = vsyncpa [#allocation3], 0
    %15 = vsyncpa [#allocation6], 0
    %16 = vsyncpa [#allocation9], 0
    %17 = vsyncpa [#allocation4], 0
    // Predicated region
    $region2: #{tpu_custom_call.1} parent=1 // pred_check
      _
    $region3: #{tpu_custom_call.1} parent=1 // pred_check_branch
      %19 = sbr.rel (0) target = $region5
    $region4: #{tpu_custom_call.1} parent=1 // pred_region
      %s21 = ssub.s32 128, 128
      %22 = vsyncadd [#allocation3], %s21
      %s24 = sshll.u32 [#allocation2], 4
      %s25 = int_to_ptr.vmem [resolvable:$true] %s24
      %27 = dma.hbm_to_vmem [thread:$0]  %s0, 128, %s25, [#allocation3]
    $region5: #{tpu_custom_call.1} parent=1 // pred_fallthru
      _
    // Predicated region
    $region6: #{tpu_custom_call.1} parent=1 // pred_check
      _
    $region7: #{tpu_custom_call.1} parent=1 // pred_check_branch
      %29 = sbr.rel (0) target = $region9
    $region8: #{tpu_custom_call.1} parent=1 // pred_region
      %s31 = ssub.s32 128, 128
      %32 = vsyncadd [#allocation6], %s31
      %s34 = sshll.u32 [#allocation5], 4
      %s35 = int_to_ptr.vmem [resolvable:$true] %s34
      %37 = dma.hbm_to_vmem [thread:$0]  %s1, 128, %s35, [#allocation6]
    $region9: #{tpu_custom_call.1} parent=1 // pred_fallthru
      _
    // Predicated region
    $region10: #{tpu_custom_call.1} parent=1 // pred_check
      _
    $region11: #{tpu_custom_call.1} parent=1 // pred_check_branch
      %39 = sbr.rel (0) target = $region13
    $region12: #{tpu_custom_call.1} parent=1 // pred_region
      _
    $region13: #{tpu_custom_call.1} parent=1 // pred_fallthru
      _
    // Predicated region
    $region14: #{tpu_custom_call.1} parent=1 // pred_check
      _
    $region15: #{tpu_custom_call.1} parent=1 // pred_check_branch
      %41 = sbr.rel (0) target = $region17
    $region16: #{tpu_custom_call.1} parent=1 // pred_region
      %s43 = ssub.s32 256, 256
      %44 = vsyncadd [#allocation6], %s43
      %s45 = sshll.u32 [#allocation7], 4
      %s46 = int_to_ptr.vmem [resolvable:$true] %s45
      %51 = dma.hbm_to_vmem [thread:$0]  %s3, 256, %s46, [#allocation6], 128, 128, 8
    $region17: #{tpu_custom_call.1} parent=1 // pred_fallthru
      _
    // Predicated region
    $region18: #{tpu_custom_call.1} parent=1 // pred_check
      _
    $region19: #{tpu_custom_call.1} parent=1 // pred_check_branch
      %53 = sbr.rel (0) target = $region21
    $region20: #{tpu_custom_call.1} parent=1 // pred_region
      _
    $region21: #{tpu_custom_call.1} parent=1 // pred_fallthru
      _
    // Predicated region
    $region22: #{tpu_custom_call.1} parent=1 // pred_check
      _
    $region23: #{tpu_custom_call.1} parent=1 // pred_check_branch
      %55 = sbr.rel (0) target = $region25
    $region24: #{tpu_custom_call.1} parent=1 // pred_region
      %s57 = ssub.s32 1024, 1024
      %58 = vsyncadd [#allocation9], %s57
      %s59 = sshll.u32 [#allocation8], 4
      %s60 = int_to_ptr.vmem [resolvable:$true] %s59
      %65 = dma.hbm_to_vmem [thread:$0]  %s5, 1024, %s60, [#allocation9], 64, 64, 4
    $region25: #{tpu_custom_call.1} parent=1 // pred_fallthru
      _
    // Predicated region
    $region26: #{tpu_custom_call.1} parent=1 // pred_check
      _
    $region27: #{tpu_custom_call.1} parent=1 // pred_check_branch
      %67 = sbr.rel (0) target = $region29
    $region28: #{tpu_custom_call.1} parent=1 // pred_region
      _
    $region29: #{tpu_custom_call.1} parent=1 // pred_fallthru
      _
    // Predicated region
    $region30: #{tpu_custom_call.1} parent=1 // pred_check
      _
    $region31: #{tpu_custom_call.1} parent=1 // pred_check_branch
      %69 = sbr.rel (0) target = $region33
    $region32: #{tpu_custom_call.1} parent=1 // pred_region
      %s71 = ssub.s32 1024, 1024
      %72 = vsyncadd [#allocation9], %s71
      %s73 = sshll.u32 [#allocation10], 4
      %s74 = int_to_ptr.vmem [resolvable:$true] %s73
      %79 = dma.hbm_to_vmem [thread:$0]  %s7, 1024, %s74, [#allocation9], 64, 64, 4
    $region33: #{tpu_custom_call.1} parent=1 // pred_fallthru
      _
    // Predicated region
    $region34: #{tpu_custom_call.1} parent=1 // pred_check
      _
    $region35: #{tpu_custom_call.1} parent=1 // pred_check_branch
      %81 = sbr.rel (0) target = $region37
    $region36: #{tpu_custom_call.1} parent=1 // pred_region
      _
    $region37: #{tpu_custom_call.1} parent=1 // pred_fallthru
      _
    // Predicated region
    $region38: #{tpu_custom_call.1} parent=1 // pred_check
      _
    $region39: #{tpu_custom_call.1} parent=1 // pred_check_branch
      %83 = sbr.rel (0) target = $region41
    $region40: #{tpu_custom_call.1} parent=1 // pred_region
      %84 = dma.done [#allocation3], 128
    $region41: #{tpu_custom_call.1} parent=1 // pred_fallthru
      _
    // Predicated region
    $region42: #{tpu_custom_call.1} parent=1 // pred_check
      _
    $region43: #{tpu_custom_call.1} parent=1 // pred_check_branch
      %86 = sbr.rel (0) target = $region45
    $region44: #{tpu_custom_call.1} parent=1 // pred_region
      %87 = dma.done [#allocation6], 128
    $region45: #{tpu_custom_call.1} parent=1 // pred_fallthru
      _
    // Predicated region
    $region46: #{tpu_custom_call.1} parent=1 // pred_check
      _
    $region47: #{tpu_custom_call.1} parent=1 // pred_check_branch
      %89 = sbr.rel (0) target = $region49
    $region48: #{tpu_custom_call.1} parent=1 // pred_region
      %90 = dma.done [#allocation6], 256
    $region49: #{tpu_custom_call.1} parent=1 // pred_fallthru
      _
    // Predicated region
    $region50: #{tpu_custom_call.1} parent=1 // pred_check
      _
    $region51: #{tpu_custom_call.1} parent=1 // pred_check_branch
      %92 = sbr.rel (0) target = $region53
    $region52: #{tpu_custom_call.1} parent=1 // pred_region
      %93 = dma.done [#allocation9], 1024
    $region53: #{tpu_custom_call.1} parent=1 // pred_fallthru
      _
    // Predicated region
    $region54: #{tpu_custom_call.1} parent=1 // pred_check
      _
    $region55: #{tpu_custom_call.1} parent=1 // pred_check_branch
      %95 = sbr.rel (0) target = $region57
    $region56: #{tpu_custom_call.1} parent=1 // pred_region
      %96 = dma.done [#allocation9], 1024
    $region57: #{tpu_custom_call.1} parent=1 // pred_fallthru
      _
    %v98 = vld [vmem:[#allocation2] sm:$0xff]
    %v99 = vpack.c.bf16 %v98, %v98
    %v100 = vld [vmem:[#allocation7] sm:$0xff]
    %v101 = vld [vmem:[#allocation7 + $0x8] sm:$0xff]
    %v102 = vld [vmem:[%s4] sm:$0x3]
    %v104 = vlaneseq
    %v105 = vshrl.u32 %v104, 7
    %v106 = vsub.s32 0, %v105
    %v107 = vrot.slane %v102, %v106
    %v108 = vlaneseq
    %v109 = vshrl.u32 %v108, 7
    %v110 = vsub.s32 1, %v109
    %v111 = vrot.slane %v102, %v110
    %v116 = vunpack.c.l.b16 %v100
    %v117 = vunpack.c.h.b16 %v100
    %v118 = vunpack.c.l.b16 %v101
    %v119 = vunpack.c.h.b16 %v101
    %v120 = vpack.c.b16 %v118, %v116
    %v121 = vpack.c.b16 %v119, %v117
    %vm124 = vcmask 130048
    %v126 = vsel %vm124, %v99, 0
    %128 = vmatprep.subr.bf16.mxu0 %v121
    %129 = vmatpush1.bf16.msra.mxu0 %v120
    %130 = vmatprep.subr.bf16.mxu0 0
    %131 = vmatpush1.bf16.msra.mxu0 0
    %132 = vmatprep.subr.bf16.mxu0 0
    %133 = vmatpush1.bf16.msra.mxu0 0
    %134 = vmatprep.subr.bf16.mxu0 0
    %135 = vmatpush1.bf16.msra.mxu0 0
    %136 = vmatprep.subr.bf16.mxu0 0
    %137 = vmatpush1.bf16.msra.mxu0 0
    %138 = vmatprep.subr.bf16.mxu0 0
    %139 = vmatpush1.bf16.msra.mxu0 0
    %140 = vmatprep.subr.bf16.mxu0 0
    %141 = vmatpush1.bf16.msra.mxu0 0
    %142 = vmatprep.subr.bf16.mxu0 0
    %143 = vmatpush1.bf16.msra.mxu0 0
    %144 = vmatprep.subr.bf16.mxu0 0
    %145 = vmatpush1.bf16.msra.mxu0 0
    %146 = vmatprep.subr.bf16.mxu0 0
    %147 = vmatpush1.bf16.msra.mxu0 0
    %148 = vmatprep.subr.bf16.mxu0 0
    %149 = vmatpush1.bf16.msra.mxu0 0
    %150 = vmatprep.subr.bf16.mxu0 0
    %151 = vmatpush1.bf16.msra.mxu0 0
    %152 = vmatprep.subr.bf16.mxu0 0
    %153 = vmatpush1.bf16.msra.mxu0 0
    %154 = vmatprep.subr.bf16.mxu0 0
    %155 = vmatpush1.bf16.msra.mxu0 0
    %156 = vmatprep.subr.bf16.mxu0 0
    %157 = vmatpush1.bf16.msra.mxu0 0
    %158 = vmatprep.subr.bf16.mxu0 0
    %159 = vmatpush1.bf16.msra.mxu0 0
    %160 = vmatprep.mubr.bf16.mxu0 0
    %161 = vmatmul.mubr.bf16.gmra.mrb[0].mxu0 %v126
    %v162 = vpop.f32.mrb[0].mxu0
    %v163 = vadd.f32 %v107, %v162
    %v164 = vpop.f32.mrb[0].mxu0
    %v165 = vadd.f32 %v111, %v164
    %v166 = vpop.f32.mrb[0].mxu0
    %v167 = vpop.f32.mrb[0].mxu0
    %168 = vdwg.mxu0
    %v169 = vtanh.pop %v163
    %v170 = vpack.c.bf16 %v169, %v169
    %v171 = vld [vmem:[#allocation8] sm:$0xf]
    %v172 = vld [vmem:[#allocation8 + $0x4] sm:$0xf]
    %v173 = vld [vmem:[#allocation8 + $0x8] sm:$0xf]
    %v174 = vld [vmem:[#allocation8 + $0xc] sm:$0xf]
    %v175 = vld [vmem:[#allocation8 + $0x10] sm:$0xf]
    %v176 = vld [vmem:[#allocation8 + $0x14] sm:$0xf]
    %v177 = vld [vmem:[#allocation8 + $0x18] sm:$0xf]
    %v178 = vld [vmem:[#allocation8 + $0x1c] sm:$0xf]
    %v179 = vld [vmem:[#allocation8 + $0x20] sm:$0xf]
    %v180 = vld [vmem:[#allocation8 + $0x24] sm:$0xf]
    %v181 = vld [vmem:[#allocation8 + $0x28] sm:$0xf]
    %v182 = vld [vmem:[#allocation8 + $0x2c] sm:$0xf]
    %v183 = vld [vmem:[#allocation8 + $0x30] sm:$0xf]
    %v184 = vld [vmem:[#allocation8 + $0x34] sm:$0xf]
    %v185 = vld [vmem:[#allocation8 + $0x38] sm:$0xf]
    %v186 = vld [vmem:[#allocation8 + $0x3c] sm:$0xf]
    %v187 = vld [vmem:[%s6] sm:$0x1]
    %v189 = vlaneseq
    %v190 = vshrl.u32 %v189, 7
    %v191 = vsub.s32 0, %v190
    %v192 = vrot.slane %v187, %v191
    %v210 = vunpack.c.l.b16 %v171
    %v211 = vunpack.c.l.b16 %v172
    %v212 = vunpack.c.l.b16 %v173
    %v213 = vunpack.c.l.b16 %v174
    %v214 = vunpack.c.l.b16 %v175
    %v215 = vunpack.c.l.b16 %v176
    %v216 = vunpack.c.l.b16 %v177
    %v217 = vunpack.c.l.b16 %v178
    %v218 = vunpack.c.l.b16 %v179
    %v219 = vunpack.c.l.b16 %v180
    %v220 = vunpack.c.l.b16 %v181
    %v221 = vunpack.c.l.b16 %v182
    %v222 = vunpack.c.l.b16 %v183
    %v223 = vunpack.c.l.b16 %v184
    %v224 = vunpack.c.l.b16 %v185
    %v225 = vunpack.c.l.b16 %v186
    %v226 = vpack.c.b16 %v211, %v210
    %v227 = vpack.c.b16 %v213, %v212
    %v228 = vpack.c.b16 %v215, %v214
    %v229 = vpack.c.b16 %v217, %v216
    %v230 = vpack.c.b16 %v219, %v218
    %v231 = vpack.c.b16 %v221, %v220
    %v232 = vpack.c.b16 %v223, %v222
    %v233 = vpack.c.b16 %v225, %v224
    %242 = vmatprep.subr.bf16.mxu0 0
    %243 = vmatpush1.bf16.msra.mxu0 %v226
    %244 = vmatprep.subr.bf16.mxu0 0
    %245 = vmatpush1.bf16.msra.mxu0 %v227
    %246 = vmatprep.subr.bf16.mxu0 0
    %247 = vmatpush1.bf16.msra.mxu0 %v228
    %248 = vmatprep.subr.bf16.mxu0 0
    %249 = vmatpush1.bf16.msra.mxu0 %v229
    %250 = vmatprep.subr.bf16.mxu0 0
    %251 = vmatpush1.bf16.msra.mxu0 %v230
    %252 = vmatprep.subr.bf16.mxu0 0
    %253 = vmatpush1.bf16.msra.mxu0 %v231
    %254 = vmatprep.subr.bf16.mxu0 0
    %255 = vmatpush1.bf16.msra.mxu0 %v232
    %256 = vmatprep.subr.bf16.mxu0 0
    %257 = vmatpush1.bf16.msra.mxu0 %v233
    %258 = vmatprep.subr.bf16.mxu0 0
    %259 = vmatpush1.bf16.msra.mxu0 0
    %260 = vmatprep.subr.bf16.mxu0 0
    %261 = vmatpush1.bf16.msra.mxu0 0
    %262 = vmatprep.subr.bf16.mxu0 0
    %263 = vmatpush1.bf16.msra.mxu0 0
    %264 = vmatprep.subr.bf16.mxu0 0
    %265 = vmatpush1.bf16.msra.mxu0 0
    %266 = vmatprep.subr.bf16.mxu0 0
    %267 = vmatpush1.bf16.msra.mxu0 0
    %268 = vmatprep.subr.bf16.mxu0 0
    %269 = vmatpush1.bf16.msra.mxu0 0
    %270 = vmatprep.subr.bf16.mxu0 0
    %271 = vmatpush1.bf16.msra.mxu0 0
    %272 = vmatprep.subr.bf16.mxu0 0
    %273 = vmatpush1.bf16.msra.mxu0 0
    %274 = vmatprep.mubr.bf16.mxu0 0
    %275 = vmatmul.mubr.bf16.gmra.mrb[0].mxu0 %v170
    %v276 = vpop.f32.mrb[0].mxu0
    %v277 = vadd.f32 %v192, %v276
    %v278 = vpop.f32.mrb[0].mxu0
    %v279 = vpop.f32.mrb[0].mxu0
    %v280 = vpop.f32.mrb[0].mxu0
    %281 = vdwg.mxu0
    %v282 = vtanh.pop %v277
    %v283 = vpack.c.bf16 %v282, %v282
    %v284 = vld [vmem:[#allocation10] sm:$0xf]
    %v285 = vld [vmem:[#allocation10 + $0x4] sm:$0xf]
    %v286 = vld [vmem:[#allocation10 + $0x8] sm:$0xf]
    %v287 = vld [vmem:[#allocation10 + $0xc] sm:$0xf]
    %v288 = vld [vmem:[#allocation10 + $0x10] sm:$0xf]
    %v289 = vld [vmem:[#allocation10 + $0x14] sm:$0xf]
    %v290 = vld [vmem:[#allocation10 + $0x18] sm:$0xf]
    %v291 = vld [vmem:[#allocation10 + $0x1c] sm:$0xf]
    %v292 = vld [vmem:[#allocation10 + $0x20] sm:$0xf]
    %v293 = vld [vmem:[#allocation10 + $0x24] sm:$0xf]
    %v294 = vld [vmem:[#allocation10 + $0x28] sm:$0xf]
    %v295 = vld [vmem:[#allocation10 + $0x2c] sm:$0xf]
    %v296 = vld [vmem:[#allocation10 + $0x30] sm:$0xf]
    %v297 = vld [vmem:[#allocation10 + $0x34] sm:$0xf]
    %v298 = vld [vmem:[#allocation10 + $0x38] sm:$0xf]
    %v299 = vld [vmem:[#allocation10 + $0x3c] sm:$0xf]
    %v300 = vld [vmem:[%s8] sm:$0x1]
    %v302 = vlaneseq
    %v303 = vshrl.u32 %v302, 7
    %v304 = vsub.s32 0, %v303
    %v305 = vrot.slane %v300, %v304
    %v323 = vunpack.c.l.b16 %v284
    %v324 = vunpack.c.l.b16 %v285
    %v325 = vunpack.c.l.b16 %v286
    %v326 = vunpack.c.l.b16 %v287
    %v327 = vunpack.c.l.b16 %v288
    %v328 = vunpack.c.l.b16 %v289
    %v329 = vunpack.c.l.b16 %v290
    %v330 = vunpack.c.l.b16 %v291
    %v331 = vunpack.c.l.b16 %v292
    %v332 = vunpack.c.l.b16 %v293
    %v333 = vunpack.c.l.b16 %v294
    %v334 = vunpack.c.l.b16 %v295
    %v335 = vunpack.c.l.b16 %v296
    %v336 = vunpack.c.l.b16 %v297
    %v337 = vunpack.c.l.b16 %v298
    %v338 = vunpack.c.l.b16 %v299
    %v339 = vpack.c.b16 %v324, %v323
    %v340 = vpack.c.b16 %v326, %v325
    %v341 = vpack.c.b16 %v328, %v327
    %v342 = vpack.c.b16 %v330, %v329
    %v343 = vpack.c.b16 %v332, %v331
    %v344 = vpack.c.b16 %v334, %v333
    %v345 = vpack.c.b16 %v336, %v335
    %v346 = vpack.c.b16 %v338, %v337
    %355 = vmatprep.subr.bf16.mxu0 0
    %356 = vmatpush1.bf16.msra.mxu0 %v339
    %357 = vmatprep.subr.bf16.mxu0 0
    %358 = vmatpush1.bf16.msra.mxu0 %v340
    %359 = vmatprep.subr.bf16.mxu0 0
    %360 = vmatpush1.bf16.msra.mxu0 %v341
    %361 = vmatprep.subr.bf16.mxu0 0
    %362 = vmatpush1.bf16.msra.mxu0 %v342
    %363 = vmatprep.subr.bf16.mxu0 0
    %364 = vmatpush1.bf16.msra.mxu0 %v343
    %365 = vmatprep.subr.bf16.mxu0 0
    %366 = vmatpush1.bf16.msra.mxu0 %v344
    %367 = vmatprep.subr.bf16.mxu0 0
    %368 = vmatpush1.bf16.msra.mxu0 %v345
    %369 = vmatprep.subr.bf16.mxu0 0
    %370 = vmatpush1.bf16.msra.mxu0 %v346
    %371 = vmatprep.subr.bf16.mxu0 0
    %372 = vmatpush1.bf16.msra.mxu0 0
    %373 = vmatprep.subr.bf16.mxu0 0
    %374 = vmatpush1.bf16.msra.mxu0 0
    %375 = vmatprep.subr.bf16.mxu0 0
    %376 = vmatpush1.bf16.msra.mxu0 0
    %377 = vmatprep.subr.bf16.mxu0 0
    %378 = vmatpush1.bf16.msra.mxu0 0
    %379 = vmatprep.subr.bf16.mxu0 0
    %380 = vmatpush1.bf16.msra.mxu0 0
    %381 = vmatprep.subr.bf16.mxu0 0
    %382 = vmatpush1.bf16.msra.mxu0 0
    %383 = vmatprep.subr.bf16.mxu0 0
    %384 = vmatpush1.bf16.msra.mxu0 0
    %385 = vmatprep.subr.bf16.mxu0 0
    %386 = vmatpush1.bf16.msra.mxu0 0
    %387 = vmatprep.mubr.bf16.mxu0 0
    %388 = vmatmul.mubr.bf16.gmra.mrb[0].mxu0 %v283
    %v389 = vpop.f32.mrb[0].mxu0
    %v390 = vadd.f32 %v305, %v389
    %v391 = vpop.f32.mrb[0].mxu0
    %v392 = vpop.f32.mrb[0].mxu0
    %v393 = vpop.f32.mrb[0].mxu0
    %394 = vdwg.mxu0
    %v395 = vlaneseq
    %v396 = vand.u32 %v395, 127
    %vm397 = vcmp.lt.s32.totalorder %v396, 24
    %v398 = vtanh.pop %v390
    %v399 = vsel %vm397, %v398, %v390
    %v400 = vld [vmem:[#allocation5] sm:$0xff]
    %v401 = vcvt.s32.f32 %v400
    %402 = vset.pattern.permute.xlu0 0
    %403 = vperm.xlu0 %402, %v400
    %v404 = vpop.permute.xlu0 %403
    %vm405 = vcmp.ge.s32.totalorder %v396, %v404
    %v406 = vadd.s32 %v400, 3
    %407 = vset.pattern.permute.xlu0 0
    %408 = vperm.xlu0 %407, %v406
    %v409 = vpop.permute.xlu0 %408
    %vm410 = vcmp.lt.s32.totalorder %v396, %v409
    %vm411 = vmand %vm405, %vm410
    %v412 = vsel %vm411, 1, 0
    %v413 = vcvt.s32.f32 %v412
    %414 = vrot.lane.b32.xlu0 %v399, 116
    %v415 = vpop.permute.xlu0 %414
    %v416 = vsub.f32 %v165, %v399
    %v417 = vsub.f32 0.0, %v415
    %v418 = vmul.f32 %v417, %v413
    %v419 = vmul.f32 %v418, 1.442695
    %v420 = vpow.pop %v419
    %v421 = vmul.f32 %v416, %v416
    %v422 = vmul.f32 %v421, %v420
    %v423 = vmul.f32 %v422, %v413
    %424 = vadd.xlane.f32.xlu0 %v423
    %v425 = vpop.xlane.xlu0 %424
    %v426 = vmul.f32 %v415, %v413
    %427 = vadd.xlane.f32.xlu0 %v426
    %v428 = vpop.xlane.xlu0 %427
    %v429 = vadd.f32 %v425, %v428
    %v430 = vadd.f32 %v429, 5.513631
    %v431 = vmul.f32 %v430, -0.5
    %v432 = vmul.f32 %v428, 0.5
    %v433 = vadd.f32 %v432, 4.2568154
    %434 = vset.pattern.permute.xlu0 1
    %435 = vperm.xlu0 %434, %v400
    %v436 = vpop.permute.xlu0 %435
    %vm437 = vcmp.ge.s32.totalorder %v396, %v436
    %v438 = vadd.s32 %v400, 4
    %439 = vset.pattern.permute.xlu0 1
    %440 = vperm.xlu0 %439, %v438
    %v441 = vpop.permute.xlu0 %440
    %vm442 = vcmp.lt.s32.totalorder %v396, %v441
    %vm443 = vmand %vm437, %vm442
    %v444 = vsel %vm443, 1, 0
    %v445 = vcvt.s32.f32 %v444
    %v446 = vld [vmem:[%s2] sm:$0x1]
    %v448 = vlaneseq
    %v449 = vshrl.u32 %v448, 7
    %v450 = vsub.s32 0, %v449
    %v451 = vrot.slane %v446, %v450
    %v453 = vmul.f32 %v399, %v451
    %v454 = vsel %vm443, %v453, -1e+30
    %455 = vmax.xlane.f32.xlu0 %v454
    %v456 = vpop.xlane.xlu0 %455
    %v457 = vsub.f32 %v453, %v456
    %v458 = vsel %vm443, %v457, 0.0
    %v459 = vmul.f32 %v458, 1.442695
    %v460 = vpow.pop %v459
    %v461 = vmul.f32 %v460, %v451
    %v462 = vadd.f32 %v461, 1e-07
    %v463 = vmul.f32 %v462, %v445
    %464 = vadd.xlane.f32.xlu0 %v463
    %v465 = vpop.xlane.xlu0 %464
    %v466 = vlog2.pop %v465
    %v467 = vmul.f32 %v466, 0.6931472
    %v468 = vrcp.pop %v465
    %v469 = vmul.f32 1.0, %v468
    %470 = vset.pattern.permute.xlu0 2
    %471 = vperm.xlu0 %470, %v400
    %v472 = vpop.permute.xlu0 %471
    %vm473 = vcmp.eq.s32.totalorder %v396, %v472
    %v474 = vsel %vm473, 1, 0
    %v475 = vcvt.s32.f32 %v474
    %v476 = vmul.f32 %v463, %v475
    %477 = vadd.xlane.f32.xlu0 %v476
    %v478 = vpop.xlane.xlu0 %477
    %v479 = vmul.f32 %v465, 1e-08
    %v480 = vadd.f32 %v478, %v479
    %v481 = vlog2.pop %v480
    %v482 = vmul.f32 %v481, 0.6931472
    %v483 = vsub.f32 %v482, %v467
    %v484 = vsel %vm443, %v463, 1.0
    %v485 = vlog2.pop %v484
    %v486 = vmul.f32 %v485, 0.6931472
    %v487 = vmul.f32 %v463, %v486
    %488 = vadd.xlane.f32.xlu0 %v487
    %v489 = vpop.xlane.xlu0 %488
    %v490 = vmul.f32 %v489, %v469
    %v491 = vsub.f32 %v467, %v490
    %vm492 = vcmp.eq.s32.totalorder %v396, %v436
    %v493 = vsel %vm492, 1, 0
    %v494 = vcvt.s32.f32 %v493
    %v495 = vmul.f32 %v463, %v494
    %496 = vadd.xlane.f32.xlu0 %v495
    %v497 = vpop.xlane.xlu0 %496
    %v498 = vmul.f32 %v497, %v469
    %499 = vset.pattern.permute.xlu0 3
    %500 = vperm.xlu0 %499, %v400
    %v501 = vpop.permute.xlu0 %500
    %vm502 = vcmp.eq.s32.totalorder %v396, %v501
    %v503 = vsel %vm502, 1, 0
    %v504 = vcvt.s32.f32 %v503
    %v505 = vmul.f32 %v399, %v504
    %506 = vadd.xlane.f32.xlu0 %v505
    %v507 = vpop.xlane.xlu0 %506
    %v508 = vmul.f32 %v431, %v401
    %v509 = vadd.f32 %v483, %v508
    %v510 = vmul.f32 %v433, %v498
    %v511 = vadd.f32 %v491, %v510
    %vm512 = vcmp.eq.s32.totalorder %v396, 0
    %vm513 = vcmp.eq.s32.totalorder %v396, 1
    %vm514 = vcmp.eq.s32.totalorder %v396, 2
    %v515 = vsel %vm514, %v511, 0.0
    %v516 = vsel %vm513, %v507, %v515
    %518 = vset.pattern.permute.xlu0 4
    %519 = vperm.xlu0 %518, %v509
    %v520 = vpop.permute.xlu0 %519
    %v522 = vsel %vm512, %v520, %v516
    %523 = vst [vmem:[#allocation11] sm:$0xff] %v522
    // Predicated region
    $region58: #{tpu_custom_call.1} parent=1 // pred_check
      _
    $region59: #{tpu_custom_call.1} parent=1 // pred_check_branch
      %525 = sbr.rel (0) target = $region61
    $region60: #{tpu_custom_call.1} parent=1 // pred_region
      %s527 = ssub.s32 128, 128
      %528 = vsyncadd [#allocation4], %s527
      %s530 = sshll.u32 [#allocation11], 4
      %s531 = int_to_ptr.vmem [resolvable:$true] %s530
      %533 = dma.vmem_to_hbm [thread:$0]  %s531, 128, %s9, [#allocation4]
    $region61: #{tpu_custom_call.1} parent=1 // pred_fallthru
      _
    // Predicated region
    $region62: #{tpu_custom_call.1} parent=1 // pred_check
      _
    $region63: #{tpu_custom_call.1} parent=1 // pred_check_branch
      %535 = sbr.rel (0) target = $region65
    $region64: #{tpu_custom_call.1} parent=1 // pred_region
      %536 = dma.done [#allocation4], 128
    $region65: #{tpu_custom_call.1} parent=1 // pred_fallthru
      _
    %537 = vsyncpa [#allocation3], 1
    %538 = vsyncpa [#allocation6], 1
    %539 = vsyncpa [#allocation9], 1
    %540 = vsyncpa [#allocation4], 1

</llo_original>
